<compile_context>
chip_gen: v6e
topology: v6e:2x2x1
jax: 0.10.0
libtpu: 0.0.40
codegen_flags: <defaults>
</compile_context>

<pallas_src>
import functools

import numpy as np

import jax
import jax.numpy as jnp
from jax.experimental import pallas as pl
from jax.experimental.pallas import tpu as pltpu


def _round_up(x, m):
    return (x + m - 1) // m * m


def _conv_bn_silu_kernel(x_ref, w_ref, shift_ref, o_ref, *, tap_offsets, rows,
                         align):
    """One (batch, row-tile) output block per grid step.

    x_ref:     (1, L, C)         flattened (im2col-folded) padded image,
                                 resident per batch element
    w_ref:     (T, C, Cout_p)    weights with BN scale folded in
    shift_ref: (1, Cout_p)       folded BN shift (f32)
    o_ref:     (1, rows, Cout_p) lane-dense output slab (rows = TH * Wp)
    """
    base = pl.program_id(1) * rows
    acc = None
    for t, off in enumerate(tap_offsets):
        start = base + off
        if off % align == 0:
            # base is a multiple of rows (itself a multiple of align), so the
            # start is sublane-aligned -> plain vector loads.
            start = pl.multiple_of(start, align)
        patch = x_ref[0, pl.ds(start, rows), :]
        contrib = jnp.dot(patch, w_ref[t], preferred_element_type=jnp.float32)
        acc = contrib if acc is None else acc + contrib

    # Epilogue in f32: BN shift (scale already folded into weights) + SiLU.
    y = acc + shift_ref[...]
    y = y * jax.nn.sigmoid(y)
    o_ref[0] = y.astype(o_ref.dtype)


@functools.partial(
    jax.jit,
    static_argnames=("k", "stride", "dilation", "groups", "compute_dtype"))
def conv_bn_silu(x_nchw, weight_oihw, gamma, beta, running_mean, running_var,
                 *, k=1, stride=1, dilation=1, groups=1, eps=1e-3,
                 compute_dtype=jnp.bfloat16):
    """PyTorch-equivalent forward: SiLU(BatchNorm2d(Conv2d(x))), NCHW in/out."""
    if stride != 1 or dilation != 1 or groups != 1:
        raise NotImplementedError(
            "conv_bn_silu kernel only supports stride=1, dilation=1, groups=1")
    if k % 2 != 1:
        raise NotImplementedError(
            "only odd kernel sizes supported (PyTorch 'same' padding, k//2)")

    N, Cin, H, W = x_nchw.shape
    Cout = weight_oihw.shape[0]
    p = k // 2

    cd = np.dtype(compute_dtype)
    sub = max(8, 32 // cd.itemsize)           # sublane quantum for tap starts
    out_dtype = x_nchw.dtype

    Cin_p = _round_up(Cin, 8)
    Cout_p = _round_up(Cout, 128)
    # TODO(synk): pad Cout to multiples of 256 on v6e/v7x (2x256x256 MXU).

    # --- tap folding policy ---------------------------------------------------
    # Fold kw (and for tiny Cin also kh) into the contraction dim, as long as
    # the folded lane width stays within one 128-lane vreg (bounds the HBM
    # duplication of the im2col buffer).
    if k * k * Cin_p <= 128:
        fh, fw = k, k        # full im2col: 1 matmul, contraction k*k*Cin_p
    elif k * Cin_p <= 128:
        fh, fw = 1, k        # width im2col: k matmuls, contraction k*Cin_p
    else:
        fh, fw = 1, 1        # per-tap: k*k matmuls, contraction Cin_p (deep)
    rem_h = 1 if fh == k else k               # remaining row-offset taps
    rem_w = 1 if fw == k else k               # remaining col-offset taps
    slack = 1 if rem_w > 1 else 0             # kw offsets wrap into next row

    # Flattened row stride: when kw is folded the horizontal halo lives in the
    # lane dim, otherwise it must live inside the row.
    Wp = _round_up(W if fw == k else W + 2 * p, sub)

    # Row tile: aim for M = TH*Wp ~ 512 rows, TH a multiple of 8; remainder
    # rows handled by padding H up to n_h*TH and slicing in the wrapper.
    th_cap = max(8, (512 // Wp) // 8 * 8)
    TH = min(_round_up(H, 8), th_cap)
    n_h = -(-H // TH)
    H_t = n_h * TH
    M = TH * Wp

    # --- BatchNorm folding (kept in f32, cast afterwards) ---------------------
    inv_std = (gamma.astype(jnp.float32) /
               jnp.sqrt(running_var.astype(jnp.float32) + eps))
    shift = (beta.astype(jnp.float32)
             - running_mean.astype(jnp.float32) * inv_std)
    shift_p = jnp.pad(shift, (0, Cout_p - Cout)).reshape(1, Cout_p)

    # Weights: OIHW -> (kh, kw, Cin, Cout), fold BN scale (f32), pad channels,
    # then reshape to (row-taps, folded-lanes, Cout_p) and cast for the MXU.
    w_kkio = jnp.transpose(weight_oihw, (2, 3, 1, 0)).astype(jnp.float32) * inv_std
    w_kkio = jnp.pad(w_kkio,
                     ((0, 0), (0, 0), (0, Cin_p - Cin), (0, Cout_p - Cout)))
    lanes = fh * fw * Cin_p
    w_mat = w_kkio.reshape(rem_h * rem_w, lanes, Cout_p).astype(cd)

    # --- activation layout: pad + (partial) im2col + flatten -------------------
    # TODO(synk): keep activations NHWC across layers to kill this transpose.
    x_nhwc = jnp.transpose(x_nchw, (0, 2, 3, 1))
    rows_flat = H_t + (rem_h - 1) + slack     # rows of the flattened buffer
    pad_h = rows_flat + (fh - 1)              # padded image height
    pad_w = Wp + (fw - 1)                     # padded image width
    x_pw = jnp.pad(
        x_nhwc,
        ((0, 0), (p, pad_h - H - p), (p, pad_w - W - p), (0, Cin_p - Cin)),
    ).astype(cd)
    parts = [x_pw[:, i:i + rows_flat, j:j + Wp, :]
             for i in range(fh) for j in range(fw)]
    x_fold = jnp.stack(parts, axis=3)         # (N, rows_flat, Wp, fh*fw, Cin_p)
    L = rows_flat * Wp
    x_flat = x_fold.reshape(N, L, lanes)

    tap_offsets = tuple(kh * Wp + kw
                        for kh in range(rem_h) for kw in range(rem_w))

    kernel = functools.partial(_conv_bn_silu_kernel, tap_offsets=tap_offsets,
                               rows=M, align=sub)

    # VMEM limit derived from the actual (double-buffered) block footprint.
    vmem_need = (2 * L * lanes * cd.itemsize                      # image
                 + 2 * w_mat.size * cd.itemsize                   # weights
                 + 2 * shift_p.size * 4                           # shift
                 + 2 * M * Cout_p * np.dtype(out_dtype).itemsize  # output tile
                 + 2 * M * Cout_p * 4)                            # f32 temps
    vmem_limit = int(min(100 * 2**20,
                         max(vmem_need * 5 // 4 + (2 << 20), 16 << 20)))

    out_flat = pl.pallas_call(
        kernel,
        out_shape=jax.ShapeDtypeStruct((N, H_t * Wp, Cout_p), out_dtype),
        grid_spec=pltpu.PrefetchScalarGridSpec(
            num_scalar_prefetch=0,
            grid=(N, n_h),
            in_specs=[
                # Flattened image: indexed by n only -> resident across the
                # inner row-tile axis (no re-DMA per h step).
                pl.BlockSpec((1, L, lanes), lambda n, h: (n, 0, 0)),
                # Weights / shift: constant index -> fully resident.
                pl.BlockSpec((rem_h * rem_w, lanes, Cout_p),
                             lambda n, h: (0, 0, 0)),
                pl.BlockSpec((1, Cout_p), lambda n, h: (0, 0)),
            ],
            out_specs=pl.BlockSpec((1, M, Cout_p), lambda n, h: (n, h, 0)),
        ),
        compiler_params=pltpu.CompilerParams(
            dimension_semantics=("parallel", "parallel"),
            vmem_limit_bytes=vmem_limit),
    )(x_flat, w_mat, shift_p)

    # Drop row/column/channel padding and return to NCHW.
    out = out_flat.reshape(N, H_t, Wp, Cout_p)[:, :H, :W, :Cout]
    return jnp.transpose(out, (0, 3, 1, 2))


def _reference(x_nchw, weight_oihw, gamma, beta, running_mean, running_var,
               *, k=3, eps=1e-3):
    p = k // 2
    y = jax.lax.conv_general_dilated(
        x_nchw, weight_oihw, window_strides=(1, 1),
        padding=((p, p), (p, p)),
        dimension_numbers=("NCHW", "OIHW", "NCHW"))
    inv_std = gamma / jnp.sqrt(running_var + eps)
    s = inv_std.reshape(1, -1, 1, 1)
    b = (beta - running_mean * inv_std).reshape(1, -1, 1, 1)
    y = y * s + b
    return y * jax.nn.sigmoid(y)


if __name__ == "__main__":
    key = jax.random.PRNGKey(0)

    def make_params(key, cin, cout, k):
        k_w, k_g, k_b, k_m, k_v = jax.random.split(key, 5)
        fan_in = cin * k * k
        bound = 1.0 / (fan_in ** 0.5)
        weight = jax.random.uniform(k_w, (cout, cin, k, k), jnp.float32,
                                    minval=-bound, maxval=bound)
        gamma = 1.0 + 0.1 * jax.random.normal(k_g, (cout,), jnp.float32)
        beta = 0.1 * jax.random.normal(k_b, (cout,), jnp.float32)
        mean = 0.1 * jax.random.normal(k_m, (cout,), jnp.float32)
        var = 1.0 + 0.1 * jax.random.uniform(k_v, (cout,), jnp.float32)
        return weight, gamma, beta, mean, var

    def run_case(name, case_key, n, cin, h, w, cout, k, compute_dtype,
                 atol, rtol):
        k_x, k_p = jax.random.split(case_key)
        x = jax.random.normal(k_x, (n, cin, h, w), jnp.float32)
        params = make_params(k_p, cin, cout, k)
        out = conv_bn_silu(x, *params, k=k, compute_dtype=compute_dtype)
        out = jax.block_until_ready(out)
        ref = _reference(x, *params, k=k)
        assert out.shape == (n, cout, h, w), f"{name}: bad shape {out.shape}"
        assert jnp.allclose(out, ref, atol=atol, rtol=rtol), (
            f"{name}: mismatch vs reference "
            f"(max abs err {jnp.max(jnp.abs(out - ref)):.2e})")

    keys = jax.random.split(key, 4)
    # Module-consistent small shape; full K*K fold path, default bf16 compute.
    run_case("k3_tinyC_bf16", keys[0], 2, 4, 16, 16, 8, 3,
             jnp.bfloat16, 3e-2, 5e-2)
    # Same shape with f32 compute for a tight numerical check.
    run_case("k3_tinyC_f32", keys[0], 2, 4, 16, 16, 8, 3,
             jnp.float32, 1e-4, 1e-4)
    # Width-fold path, H % 8 != 0, W % 8 != 0 (remainder row tile, Wp padding).
    run_case("k3_midC_f32", keys[1], 1, 24, 12, 20, 16, 3,
             jnp.float32, 1e-4, 1e-4)
    # Per-tap path (folding would exceed one vreg of lanes).
    run_case("k3_bigC_f32", keys[2], 1, 48, 8, 8, 32, 3,
             jnp.float32, 1e-4, 1e-4)
    # k=1 (module default), odd spatial sizes.
    run_case("k1_f32", keys[3], 1, 4, 9, 7, 8, 1,
             jnp.float32, 1e-4, 1e-4)

    print("KERNEL_OK")
</pallas_src>

<mosaic_0001>
module attributes {stable_mosaic.version = 11 : i64} {
  func.func @_conv_bn_silu_kernel(%arg0: i32, %arg1: i32, %arg2: memref<1x256x72xbf16, #tpu.memory_space<vmem>>, %arg3: memref<1x72x128xbf16, #tpu.memory_space<vmem>>, %arg4: memref<1x128xf32, #tpu.memory_space<vmem>>, %arg5: memref<1x256x128xf32, #tpu.memory_space<vmem>>) attributes {dimension_semantics = [#tpu.dimension_semantics<parallel>, #tpu.dimension_semantics<parallel>], iteration_bounds = array<i64: 2, 1>, scalar_prefetch = 0 : i64, scratch_operands = 0 : i64, tpu.core_type = #tpu.core_type<tc>, window_params = [{transform_indices = @transform_0, window_bounds = array<i64: 1, 256, 72>}, {pipeline_mode = #tpu.pipeline_mode<synchronous>, transform_indices = @transform_1, window_bounds = array<i64: 1, 72, 128>}, {pipeline_mode = #tpu.pipeline_mode<synchronous>, transform_indices = @transform_2, window_bounds = array<i64: 1, 128>}, {transform_indices = @transform_3, window_bounds = array<i64: 1, 256, 128>}]} {
    %c256_i32 = arith.constant 256 : i32
    %0 = arith.muli %arg1, %c256_i32 : i32
    %c0_i32 = arith.constant 0 : i32
    %1 = arith.addi %0, %c0_i32 : i32
    %2 = tpu.assume_multiple %1, 16 : i32
    %c0 = arith.constant 0 : index
    %3 = arith.index_cast %2 : i32 to index
    %c0_0 = arith.constant 0 : index
    %4 = vector.load %arg2[%c0, %3, %c0_0] : memref<1x256x72xbf16, #tpu.memory_space<vmem>>, vector<1x256x72xbf16>
    %5 = vector.shape_cast %4 : vector<1x256x72xbf16> to vector<256x72xbf16>
    %c0_1 = arith.constant 0 : index
    %c0_2 = arith.constant 0 : index
    %c0_3 = arith.constant 0 : index
    %6 = vector.load %arg3[%c0_1, %c0_2, %c0_3] : memref<1x72x128xbf16, #tpu.memory_space<vmem>>, vector<1x72x128xbf16>
    %7 = vector.shape_cast %6 : vector<1x72x128xbf16> to vector<72x128xbf16>
    %cst = arith.constant dense<0.000000e+00> : vector<256x128xf32>
    %8 = tpu.matmul %5, %7, %cst {dimension_numbers = #tpu.dot_dimension_numbers<[1], [0], [0], [1], [0, 0, 1, 1], [], []>} : vector<256x72xbf16>, vector<72x128xbf16>, vector<256x128xf32> -> vector<256x128xf32>
    %c0_4 = arith.constant 0 : index
    %c0_5 = arith.constant 0 : index
    %9 = vector.load %arg4[%c0_4, %c0_5] : memref<1x128xf32, #tpu.memory_space<vmem>>, vector<1x128xf32>
    %10 = vector.broadcast %9 : vector<1x128xf32> to vector<256x128xf32>
    %11 = arith.addf %8, %10 : vector<256x128xf32>
    %12 = arith.negf %11 : vector<256x128xf32>
    %13 = math.exp %12 : vector<256x128xf32>
    %cst_6 = arith.constant 1.000000e+00 : f32
    %14 = vector.broadcast %cst_6 : f32 to vector<256x128xf32>
    %15 = arith.addf %14, %13 : vector<256x128xf32>
    %16 = arith.divf %14, %15 : vector<256x128xf32>
    %17 = arith.mulf %11, %16 : vector<256x128xf32>
    %c0_7 = arith.constant 0 : index
    %c0_8 = arith.constant 0 : index
    %c0_9 = arith.constant 0 : index
    %18 = vector.load %arg5[%c0_7, %c0_8, %c0_9] : memref<1x256x128xf32, #tpu.memory_space<vmem>>, vector<1x256x128xf32>
    %19 = vector.shape_cast %18 : vector<1x256x128xf32> to vector<256x128xf32>
    %20 = vector.shape_cast %17 : vector<256x128xf32> to vector<1x256x128xf32>
    tpu.vector_store %arg5[%c0_7, %c0_8, %c0_9], %20 {strides = array<i32>} : memref<1x256x128xf32, #tpu.memory_space<vmem>>, vector<1x256x128xf32>,
    return
  }
  func.func @transform_0(%arg0: i32, %arg1: i32) -> (i32, i32, i32) {
    %c0_i32 = arith.constant 0 : i32
    %c0_i32_0 = arith.constant 0 : i32
    %c0_i32_1 = arith.constant 0 : i32
    return %arg0, %c0_i32, %c0_i32_0 : i32, i32, i32
  }
  func.func @transform_1(%arg0: i32, %arg1: i32) -> (i32, i32, i32) {
    %c0_i32 = arith.constant 0 : i32
    %c0_i32_0 = arith.constant 0 : i32
    %c0_i32_1 = arith.constant 0 : i32
    %c0_i32_2 = arith.constant 0 : i32
    return %c0_i32, %c0_i32_0, %c0_i32_1 : i32, i32, i32
  }
  func.func @transform_2(%arg0: i32, %arg1: i32) -> (i32, i32) {
    %c0_i32 = arith.constant 0 : i32
    %c0_i32_0 = arith.constant 0 : i32
    %c0_i32_1 = arith.constant 0 : i32
    return %c0_i32, %c0_i32_0 : i32, i32
  }
  func.func @transform_3(%arg0: i32, %arg1: i32) -> (i32, i32, i32) {
    %c0_i32 = arith.constant 0 : i32
    %c0_i32_0 = arith.constant 0 : i32
    return %arg0, %arg1, %c0_i32 : i32, i32, i32
  }
}

</mosaic_0001>

<llo_original>
// kernel: conv_bn_silu.1
$region0: #{conv_bn_silu.1}
  #allocation0 [shape = 'u32[]', space=smem, size = 0x4, offset = 0x4, fixed_abs, tag = 'smem constant byte address 0x4 - core index']
  #allocation1 [shape = 'u32[144,128]{1,0:T(1,128)}', space=vmem, size = 0x12000, scoped, tag = 'internal scratch']
  %s0 = inlined_call_operand.vmem [shape: bf16[2,256,72], index: 0, kind: input, shape index: {}]
  %s1 = inlined_call_operand.vmem [shape: bf16[1,72,128], index: 1, kind: input, shape index: {}]
  %s2 = inlined_call_operand.vmem [shape: f32[1,128], index: 2, kind: input, shape index: {}]
  %s3 = inlined_call_operand.vmem [shape: f32[2,256,128], index: 3, kind: output, shape index: {}]
  %s4 = sld [smem:[#allocation0]]
  $region45: #{conv_bn_silu.1} parent=0
    _
  %s6 = ssub.s32 1, %s4
  %s7 = scalar_select 0, %s6, %s4
  loop: start=0, step=1, limit=4
  $region2: #{conv_bn_silu.1} parent=0 // loop_pre_header
    _
  $region3: #{conv_bn_silu.1} parent=0 // loop_header
    %s9 = sphi 0, %s13
    %p10 = scmp.ge.s32.totalorder %s9, 4
    %s16 = sphi 0, %s28
    %s17 = sphi 0, %s24
    %s18 = sphi 0, %s16
    %s19 = sphi 0, %s17
    %s20 = sphi 0, %s18
    %s21 = sphi 0, %s19
    %s31 = sphi 0, %s33
    %s34 = sphi 0, %s31
    %s35 = sphi 0, %s34
    %s51 = sphi 0, %s35
    %s55 = sphi 0, %s55
    %s57 = sphi 0, %s55
    %s58 = sphi 0, %s57
    %s72 = sphi 0, %s58
    %s76 = sphi 0, %s76
    %s78 = sphi 0, %s76
    %s79 = sphi 0, %s78
    %s93 = sphi 0, %s79
    %s101 = sphi 0, %s103
    %s104 = sphi 0, %s101
    %s105 = sphi 0, %s104
    %s121 = sphi 0, %s105
  $region4: #{conv_bn_silu.1} parent=0 // loop_header_branch
    %12 = sbr.rel (%p10) target = $region8
  $region5: #{conv_bn_silu.1} parent=0 // loop_body
    %s14 = ssub.s32 %s9, 1
    %s15 = ssub.s32 %s9, 2
    %s22 = sadd.s32 1, %s17
    %p23 = scmp.ge.s32.totalorder %s22, 1
    %s24 = scalar_select %p23, 0, %s22
    %s25 = sadd.s32 1, %s16
    %s26 = scalar_select %p23, %s25, %s16
    %p27 = scmp.ge.s32.totalorder %s26, 2
    %s28 = scalar_select %p27, 0, %s26
    %s29 = ssub.s32 %s16, %s28
    %p30 = scmp.eq.s32.totalorder %s29, 0
    %s32 = sadd.s32 %s31, 1
    %s33 = scalar_select %p30, %s31, %s32
    %p36 = pneg %p30
    %p37 = scmp.eq.s32.totalorder %s9, 1
    %p38 = por %p36, %p37
    %p39 = scmp.ne.s32.totalorder %s31, %s34
    %p40 = scmp.eq.s32.totalorder %s9, 0
    %p41 = por %p39, %p40
    %p42 = scmp.ne.s32.totalorder %s31, %s34
    %p43 = scmp.eq.s32.totalorder %s14, 1
    %p44 = por %p42, %p43
    %p45 = scmp.ne.s32.totalorder %s34, %s35
    %p46 = scmp.eq.s32.totalorder %s14, 0
    %p47 = por %p45, %p46
    %p48 = scmp.ne.s32.totalorder %s34, %s35
    %p49 = scmp.eq.s32.totalorder %s15, 1
    %p50 = por %p48, %p49
    %p52 = scmp.ne.s32.totalorder %s35, %s51
    %p53 = scmp.eq.s32.totalorder %s15, 0
    %p54 = por %p52, %p53
    %s56 = sadd.s32 %s55, 1
    %p59 = scmp.eq.s32.totalorder %s9, 1
    %p60 = scmp.ne.s32.totalorder %s55, %s57
    %p61 = scmp.eq.s32.totalorder %s9, 0
    %p62 = por %p60, %p61
    %p63 = scmp.ne.s32.totalorder %s55, %s57
    %p64 = scmp.eq.s32.totalorder %s14, 1
    %p65 = por %p63, %p64
    %p66 = scmp.ne.s32.totalorder %s57, %s58
    %p67 = scmp.eq.s32.totalorder %s14, 0
    %p68 = por %p66, %p67
    %p69 = scmp.ne.s32.totalorder %s57, %s58
    %p70 = scmp.eq.s32.totalorder %s15, 1
    %p71 = por %p69, %p70
    %p73 = scmp.ne.s32.totalorder %s58, %s72
    %p74 = scmp.eq.s32.totalorder %s15, 0
    %p75 = por %p73, %p74
    %s77 = sadd.s32 %s76, 1
    %p80 = scmp.eq.s32.totalorder %s9, 1
    %p81 = scmp.ne.s32.totalorder %s76, %s78
    %p82 = scmp.eq.s32.totalorder %s9, 0
    %p83 = por %p81, %p82
    %p84 = scmp.ne.s32.totalorder %s76, %s78
    %p85 = scmp.eq.s32.totalorder %s14, 1
    %p86 = por %p84, %p85
    %p87 = scmp.ne.s32.totalorder %s78, %s79
    %p88 = scmp.eq.s32.totalorder %s14, 0
    %p89 = por %p87, %p88
    %p90 = scmp.ne.s32.totalorder %s78, %s79
    %p91 = scmp.eq.s32.totalorder %s15, 1
    %p92 = por %p90, %p91
    %p94 = scmp.ne.s32.totalorder %s79, %s93
    %p95 = scmp.eq.s32.totalorder %s15, 0
    %p96 = por %p94, %p95
    %s97 = ssub.s32 %s16, %s28
    %s98 = ssub.s32 %s17, %s24
    %s99 = sor.u32 %s97, %s98
    %p100 = scmp.eq.s32.totalorder %s99, 0
    %s102 = sadd.s32 %s101, 1
    %s103 = scalar_select %p100, %s101, %s102
    %p106 = pneg %p100
    %p107 = scmp.eq.s32.totalorder %s9, 1
    %p108 = por %p106, %p107
    %p109 = scmp.ne.s32.totalorder %s101, %s104
    %p110 = scmp.eq.s32.totalorder %s9, 0
    %p111 = por %p109, %p110
    %p112 = scmp.ne.s32.totalorder %s101, %s104
    %p113 = scmp.eq.s32.totalorder %s14, 1
    %p114 = por %p112, %p113
    %p115 = scmp.ne.s32.totalorder %s104, %s105
    %p116 = scmp.eq.s32.totalorder %s14, 0
    %p117 = por %p115, %p116
    %p118 = scmp.ne.s32.totalorder %s104, %s105
    %p119 = scmp.eq.s32.totalorder %s15, 1
    %p120 = por %p118, %p119
    %p122 = scmp.ne.s32.totalorder %s105, %s121
    %p123 = scmp.eq.s32.totalorder %s15, 0
    %p124 = por %p122, %p123
    %p125 = scmp.le.s32.totalorder 1, %s9
    %p126 = scmp.lt.s32.totalorder %s9, 3
    %p127 = pnand %p125, %p126
    %p128 = pneg %p127
    // Predicated region
    $region9: #{conv_bn_silu.1} parent=5 // pred_check
      _
    $region10: #{conv_bn_silu.1} parent=5 // pred_check_branch
      %130 = sbr.rel (%p127) target = $region12
    $region11: #{conv_bn_silu.1} parent=5 // pred_region
      %s131 = ssub.s32 %s9, 1
      // Predicated region
      $region13: #{conv_bn_silu.1} parent=11 // pred_check
        %p132 = pneg %p68
      $region14: #{conv_bn_silu.1} parent=11 // pred_check_branch
        %134 = sbr.rel (%p132) target = $region16
      $region15: #{conv_bn_silu.1} parent=11 // pred_region
        _
      $region16: #{conv_bn_silu.1} parent=11 // pred_fallthru
        _
      // Predicated region
      $region17: #{conv_bn_silu.1} parent=11 // pred_check
        %p135 = pneg %p89
      $region18: #{conv_bn_silu.1} parent=11 // pred_check_branch
        %137 = sbr.rel (%p135) target = $region20
      $region19: #{conv_bn_silu.1} parent=11 // pred_region
        _
      $region20: #{conv_bn_silu.1} parent=11 // pred_fallthru
        _
    $region12: #{conv_bn_silu.1} parent=5 // pred_fallthru
      _
    %p138 = scmp.lt.s32.totalorder %s9, 2
    // Predicated region
    $region21: #{conv_bn_silu.1} parent=5 // pred_check
      %p139 = pneg %p138
    $region22: #{conv_bn_silu.1} parent=5 // pred_check_branch
      %141 = sbr.rel (%p139) target = $region24
    $region23: #{conv_bn_silu.1} parent=5 // pred_region
      // Predicated region
      $region25: #{conv_bn_silu.1} parent=23 // pred_check
        %p142 = pneg %p41
      $region26: #{conv_bn_silu.1} parent=23 // pred_check_branch
        %144 = sbr.rel (%p142) target = $region28
      $region27: #{conv_bn_silu.1} parent=23 // pred_region
        %p145 = scmp.lt.s32.totalorder %s16, 1
        %s146 = scalar_select %p145, %s16, 1
        %s147 = smul.addr %s146, 32
        %s148 = smul.addr %s147, 4
        %s149 = scalar_lea.vmem %s0, %s148
      $region28: #{conv_bn_silu.1} parent=23 // pred_fallthru
        _
    $region24: #{conv_bn_silu.1} parent=5 // pred_fallthru
      _
    %p150 = scmp.le.s32.totalorder 1, %s9
    %p151 = scmp.lt.s32.totalorder %s9, 3
    %p152 = pnand %p150, %p151
    %p153 = pneg %p152
    // Predicated region
    $region29: #{conv_bn_silu.1} parent=5 // pred_check
      _
    $region30: #{conv_bn_silu.1} parent=5 // pred_check_branch
      %155 = sbr.rel (%p152) target = $region32
    $region31: #{conv_bn_silu.1} parent=5 // pred_region
      %s156 = ssub.s32 %s9, 1
      %p157 = scmp.lt.s32.totalorder %s18, 1
      %s158 = scalar_select %p157, %s18, 1
      %s159 = smul.addr %s158, 32
      %s160 = smul.addr %s159, 4
      %s161 = scalar_lea.vmem %s0, %s160
      %p162 = pneg %p47
      %p163 = pneg %p44
      %p164 = pneg %p68
      %p165 = pneg %p65
      %p166 = pneg %p89
      %p167 = pneg %p86
      %p168 = pneg %p117
      %p169 = pneg %p114
      %s170 = smul.u32 32, %s19
      %p171 = scmp.lt.s32.totalorder %s18, 1
      %s172 = scalar_select %p171, %s18, 1
      %p173 = scmp.lt.s32.totalorder %s170, 31
      %s174 = scalar_select %p173, %s170, 31
      %s175 = smul.addr %s172, 32
      %s176 = sadd.s32 %s174, %s175
      %s177 = smul.addr %s176, 8
      %s178 = scalar_lea.vmem %s3, %s177
      %p179 = scmp.lt.s32.totalorder %s18, 1
      %s180 = scalar_select %p179, %s18, 1
      %s181 = smul.addr %s180, 32
      %s182 = smul.addr %s181, 4
      %s183 = scalar_lea.vmem %s0, %s182
      %s184 = smul.u32 32, %s19
      %p185 = scmp.lt.s32.totalorder %s18, 1
      %s186 = scalar_select %p185, %s18, 1
      %p187 = scmp.lt.s32.totalorder %s184, 31
      %s188 = scalar_select %p187, %s184, 31
      %s189 = smul.addr %s186, 32
      %s190 = sadd.s32 %s188, %s189
      %s191 = smul.addr %s190, 8
      %s192 = scalar_lea.vmem %s3, %s191
      %s193 = smul.u32 32, %s19
      %s195 = smul.u32 %s19, 256
      %s196 = sshra.s32 %s195, 3
      %s197 = sand.u32 %s195, 7
      %s198 = smul.addr %s196, 4
      %s199 = scalar_lea.vmem %s183, %s198
      %v200 = vld [vmem:[%s199] sm:$0xf]
      %v201 = vld [vmem:[%s199 + $0x4] sm:$0xf]
      %v202 = vld [vmem:[%s199 + $0x8] sm:$0xf]
      %v203 = vld [vmem:[%s199 + $0xc] sm:$0xf]
      %v204 = vld [vmem:[%s199 + $0x10] sm:$0xf]
      %v205 = vld [vmem:[%s199 + $0x14] sm:$0xf]
      %v206 = vld [vmem:[%s199 + $0x18] sm:$0xf]
      %v207 = vld [vmem:[%s199 + $0x1c] sm:$0xf]
      %v208 = vld [vmem:[%s199 + $0x20] sm:$0xf]
      %v209 = vld [vmem:[%s199 + $0x24] sm:$0xf]
      %v210 = vld [vmem:[%s199 + $0x28] sm:$0xf]
      %v211 = vld [vmem:[%s199 + $0x2c] sm:$0xf]
      %v212 = vld [vmem:[%s199 + $0x30] sm:$0xf]
      %v213 = vld [vmem:[%s199 + $0x34] sm:$0xf]
      %v214 = vld [vmem:[%s199 + $0x38] sm:$0xf]
      %v215 = vld [vmem:[%s199 + $0x3c] sm:$0xf]
      %v216 = vld [vmem:[%s199 + $0x40] sm:$0xf]
      %v217 = vld [vmem:[%s199 + $0x44] sm:$0xf]
      %v218 = vld [vmem:[%s199 + $0x48] sm:$0xf]
      %v219 = vld [vmem:[%s199 + $0x4c] sm:$0xf]
      %v220 = vld [vmem:[%s199 + $0x50] sm:$0xf]
      %v221 = vld [vmem:[%s199 + $0x54] sm:$0xf]
      %v222 = vld [vmem:[%s199 + $0x58] sm:$0xf]
      %v223 = vld [vmem:[%s199 + $0x5c] sm:$0xf]
      %v224 = vld [vmem:[%s199 + $0x60] sm:$0xf]
      %v225 = vld [vmem:[%s199 + $0x64] sm:$0xf]
      %v226 = vld [vmem:[%s199 + $0x68] sm:$0xf]
      %v227 = vld [vmem:[%s199 + $0x6c] sm:$0xf]
      %v228 = vld [vmem:[%s199 + $0x70] sm:$0xf]
      %v229 = vld [vmem:[%s199 + $0x74] sm:$0xf]
      %v230 = vld [vmem:[%s199 + $0x78] sm:$0xf]
      %v231 = vld [vmem:[%s199 + $0x7c] sm:$0xf]
      %v232 = vld [vmem:[%s1] sm:$0xf]
      %v233 = vld [vmem:[%s1 + $0x4] sm:$0xf]
      %v234 = vld [vmem:[%s1 + $0x8] sm:$0xf]
      %v235 = vld [vmem:[%s1 + $0xc] sm:$0xf]
      %v236 = vld [vmem:[%s1 + $0x10] sm:$0xf]
      %v237 = vld [vmem:[%s1 + $0x14] sm:$0xf]
      %v238 = vld [vmem:[%s1 + $0x18] sm:$0xf]
      %v239 = vld [vmem:[%s1 + $0x1c] sm:$0xf]
      %v240 = vld [vmem:[%s1 + $0x20] sm:$0xf]
      %v241 = vld [vmem:[%s2] sm:$0x1]
      %v243 = vlaneseq
      %v244 = vshrl.u32 %v243, 7
      %v245 = vsub.s32 0, %v244
      %v246 = vrot.slane %v241, %v245
      %v280 = vunpack.c.l.b16 %v200
      %v281 = vunpack.c.l.b16 %v201
      %v282 = vunpack.c.l.b16 %v202
      %v283 = vunpack.c.l.b16 %v203
      %v284 = vunpack.c.l.b16 %v204
      %v285 = vunpack.c.l.b16 %v205
      %v286 = vunpack.c.l.b16 %v206
      %v287 = vunpack.c.l.b16 %v207
      %v288 = vunpack.c.l.b16 %v208
      %v289 = vunpack.c.l.b16 %v209
      %v290 = vunpack.c.l.b16 %v210
      %v291 = vunpack.c.l.b16 %v211
      %v292 = vunpack.c.l.b16 %v212
      %v293 = vunpack.c.l.b16 %v213
      %v294 = vunpack.c.l.b16 %v214
      %v295 = vunpack.c.l.b16 %v215
      %v296 = vunpack.c.l.b16 %v216
      %v297 = vunpack.c.l.b16 %v217
      %v298 = vunpack.c.l.b16 %v218
      %v299 = vunpack.c.l.b16 %v219
      %v300 = vunpack.c.l.b16 %v220
      %v301 = vunpack.c.l.b16 %v221
      %v302 = vunpack.c.l.b16 %v222
      %v303 = vunpack.c.l.b16 %v223
      %v304 = vunpack.c.l.b16 %v224
      %v305 = vunpack.c.l.b16 %v225
      %v306 = vunpack.c.l.b16 %v226
      %v307 = vunpack.c.l.b16 %v227
      %v308 = vunpack.c.l.b16 %v228
      %v309 = vunpack.c.l.b16 %v229
      %v310 = vunpack.c.l.b16 %v230
      %v311 = vunpack.c.l.b16 %v231
      %v312 = vpack.c.b16 %v281, %v280
      %v313 = vpack.c.b16 %v283, %v282
      %v314 = vpack.c.b16 %v285, %v284
      %v315 = vpack.c.b16 %v287, %v286
      %v316 = vpack.c.b16 %v289, %v288
      %v317 = vpack.c.b16 %v291, %v290
      %v318 = vpack.c.b16 %v293, %v292
      %v319 = vpack.c.b16 %v295, %v294
      %v320 = vpack.c.b16 %v297, %v296
      %v321 = vpack.c.b16 %v299, %v298
      %v322 = vpack.c.b16 %v301, %v300
      %v323 = vpack.c.b16 %v303, %v302
      %v324 = vpack.c.b16 %v305, %v304
      %v325 = vpack.c.b16 %v307, %v306
      %v326 = vpack.c.b16 %v309, %v308
      %v327 = vpack.c.b16 %v311, %v310
      %v337 = vunpack.c.l.b16 %v232
      %v338 = vunpack.c.l.b16 %v233
      %v339 = vunpack.c.l.b16 %v234
      %v340 = vunpack.c.l.b16 %v235
      %v341 = vunpack.c.l.b16 %v236
      %v342 = vunpack.c.l.b16 %v237
      %v343 = vunpack.c.l.b16 %v238
      %v344 = vunpack.c.l.b16 %v239
      %v345 = vunpack.c.l.b16 %v240
      %v346 = vpack.c.b16 %v338, %v337
      %v347 = vpack.c.b16 %v340, %v339
      %v348 = vpack.c.b16 %v342, %v341
      %v349 = vpack.c.b16 %v344, %v343
      %v350 = vpack.c.b16 %v345, %v345
      %vm355 = vcmask 588800
      %v357 = vsel %vm355, %v312, 0
      %v360 = vsel %vm355, %v313, 0
      %v363 = vsel %vm355, %v314, 0
      %v366 = vsel %vm355, %v315, 0
      %v369 = vsel %vm355, %v316, 0
      %v372 = vsel %vm355, %v317, 0
      %v375 = vsel %vm355, %v318, 0
      %v378 = vsel %vm355, %v319, 0
      %v381 = vsel %vm355, %v320, 0
      %v384 = vsel %vm355, %v321, 0
      %v387 = vsel %vm355, %v322, 0
      %v390 = vsel %vm355, %v323, 0
      %v393 = vsel %vm355, %v324, 0
      %v396 = vsel %vm355, %v325, 0
      %v399 = vsel %vm355, %v326, 0
      %v402 = vsel %vm355, %v327, 0
      %vm404 = vcmask 1043456
      %v406 = vsel %vm404, %v350, 0
      %408 = vmatprep.subr.bf16.mxu0 0
      %409 = vmatpush1.bf16.msra.mxu0 0
      %410 = vmatprep.subr.bf16.mxu0 0
      %411 = vmatpush1.bf16.msra.mxu0 0
      %412 = vmatprep.subr.bf16.mxu0 0
      %413 = vmatpush1.bf16.msra.mxu0 0
      %414 = vmatprep.subr.bf16.mxu0 0
      %415 = vmatpush1.bf16.msra.mxu0 %v406
      %416 = vmatprep.subr.bf16.mxu0 0
      %417 = vmatpush1.bf16.msra.mxu0 %v349
      %418 = vmatprep.subr.bf16.mxu0 0
      %419 = vmatpush1.bf16.msra.mxu0 %v348
      %420 = vmatprep.subr.bf16.mxu0 0
      %421 = vmatpush1.bf16.msra.mxu0 %v347
      %422 = vmatprep.subr.bf16.mxu0 0
      %423 = vmatpush1.bf16.msra.mxu0 %v346
      %424 = vmatprep.subr.bf16.mxu0 0
      %425 = vmatpush2.bf16.msra.mxu0 0
      %426 = vmatprep.subr.bf16.mxu0 0
      %427 = vmatpush2.bf16.msra.mxu0 0
      %428 = vmatprep.subr.bf16.mxu0 0
      %429 = vmatpush2.bf16.msra.mxu0 0
      %430 = vmatprep.subr.bf16.mxu0 0
      %431 = vmatpush2.bf16.msra.mxu0 0
      %432 = vmatprep.subr.bf16.mxu0 0
      %433 = vmatpush2.bf16.msra.mxu0 0
      %434 = vmatprep.subr.bf16.mxu0 0
      %435 = vmatpush2.bf16.msra.mxu0 0
      %436 = vmatprep.subr.bf16.mxu0 0
      %437 = vmatpush2.bf16.msra.mxu0 0
      %438 = vmatprep.subr.bf16.mxu0 0
      %439 = vmatpush2.bf16.msra.mxu0 0
      %440 = vmatprep.mubr.bf16.mxu0 0
      %441 = vmatmul.mubr.bf16.gmra.mxu0 %v357
      %v442 = vpop.f32.mrf.mxu0
      %v443 = vadd.f32 %v246, %v442
      %v444 = vpop.f32.mrf.mxu0
      %v445 = vpop.f32.mrf.mxu0
      %v446 = vadd.f32 %v246, %v445
      %v447 = vpop.f32.mrf.mxu0
      %448 = vmatprep.mubr.bf16.mxu0 0
      %449 = vmatmul.mubr.bf16.gmra.mxu0 %v360
      %v450 = vpop.f32.mrf.mxu0
      %v451 = vadd.f32 %v246, %v450
      %v452 = vpop.f32.mrf.mxu0
      %v453 = vpop.f32.mrf.mxu0
      %v454 = vadd.f32 %v246, %v453
      %v455 = vpop.f32.mrf.mxu0
      %456 = vmatprep.mubr.bf16.mxu0 0
      %457 = vmatmul.mubr.bf16.gmra.mxu0 %v363
      %v458 = vpop.f32.mrf.mxu0
      %v459 = vadd.f32 %v246, %v458
      %v460 = vpop.f32.mrf.mxu0
      %v461 = vpop.f32.mrf.mxu0
      %v462 = vadd.f32 %v246, %v461
      %v463 = vpop.f32.mrf.mxu0
      %464 = vmatprep.mubr.bf16.mxu0 0
      %465 = vmatmul.mubr.bf16.gmra.mxu0 %v366
      %v466 = vpop.f32.mrf.mxu0
      %v467 = vadd.f32 %v246, %v466
      %v468 = vpop.f32.mrf.mxu0
      %v469 = vpop.f32.mrf.mxu0
      %v470 = vadd.f32 %v246, %v469
      %v471 = vpop.f32.mrf.mxu0
      %472 = vmatprep.mubr.bf16.mxu0 0
      %473 = vmatmul.mubr.bf16.gmra.mxu0 %v369
      %v474 = vpop.f32.mrf.mxu0
      %v475 = vadd.f32 %v246, %v474
      %v476 = vpop.f32.mrf.mxu0
      %v477 = vpop.f32.mrf.mxu0
      %v478 = vadd.f32 %v246, %v477
      %v479 = vpop.f32.mrf.mxu0
      %480 = vmatprep.mubr.bf16.mxu0 0
      %481 = vmatmul.mubr.bf16.gmra.mxu0 %v372
      %v482 = vpop.f32.mrf.mxu0
      %v483 = vadd.f32 %v246, %v482
      %v484 = vpop.f32.mrf.mxu0
      %v485 = vpop.f32.mrf.mxu0
      %v486 = vadd.f32 %v246, %v485
      %v487 = vpop.f32.mrf.mxu0
      %488 = vmatprep.mubr.bf16.mxu0 0
      %489 = vmatmul.mubr.bf16.gmra.mxu0 %v375
      %v490 = vpop.f32.mrf.mxu0
      %v491 = vadd.f32 %v246, %v490
      %v492 = vpop.f32.mrf.mxu0
      %v493 = vpop.f32.mrf.mxu0
      %v494 = vadd.f32 %v246, %v493
      %v495 = vpop.f32.mrf.mxu0
      %496 = vmatprep.mubr.bf16.mxu0 0
      %497 = vmatmul.mubr.bf16.gmra.mxu0 %v378
      %v498 = vpop.f32.mrf.mxu0
      %v499 = vadd.f32 %v246, %v498
      %v500 = vpop.f32.mrf.mxu0
      %v501 = vpop.f32.mrf.mxu0
      %v502 = vadd.f32 %v246, %v501
      %v503 = vpop.f32.mrf.mxu0
      %504 = vmatprep.mubr.bf16.mxu0 0
      %505 = vmatmul.mubr.bf16.gmra.mxu0 %v381
      %v506 = vpop.f32.mrf.mxu0
      %v507 = vadd.f32 %v246, %v506
      %v508 = vpop.f32.mrf.mxu0
      %v509 = vpop.f32.mrf.mxu0
      %v510 = vadd.f32 %v246, %v509
      %v511 = vpop.f32.mrf.mxu0
      %512 = vmatprep.mubr.bf16.mxu0 0
      %513 = vmatmul.mubr.bf16.gmra.mxu0 %v384
      %v514 = vpop.f32.mrf.mxu0
      %v515 = vadd.f32 %v246, %v514
      %v516 = vpop.f32.mrf.mxu0
      %v517 = vpop.f32.mrf.mxu0
      %v518 = vadd.f32 %v246, %v517
      %v519 = vpop.f32.mrf.mxu0
      %520 = vmatprep.mubr.bf16.mxu0 0
      %521 = vmatmul.mubr.bf16.gmra.mxu0 %v387
      %v522 = vpop.f32.mrf.mxu0
      %v523 = vadd.f32 %v246, %v522
      %v524 = vpop.f32.mrf.mxu0
      %v525 = vpop.f32.mrf.mxu0
      %v526 = vadd.f32 %v246, %v525
      %v527 = vpop.f32.mrf.mxu0
      %528 = vmatprep.mubr.bf16.mxu0 0
      %529 = vmatmul.mubr.bf16.gmra.mxu0 %v390
      %v530 = vpop.f32.mrf.mxu0
      %v531 = vadd.f32 %v246, %v530
      %v532 = vpop.f32.mrf.mxu0
      %v533 = vpop.f32.mrf.mxu0
      %v534 = vadd.f32 %v246, %v533
      %v535 = vpop.f32.mrf.mxu0
      %536 = vmatprep.mubr.bf16.mxu0 0
      %537 = vmatmul.mubr.bf16.gmra.mxu0 %v393
      %v538 = vpop.f32.mrf.mxu0
      %v539 = vadd.f32 %v246, %v538
      %v540 = vpop.f32.mrf.mxu0
      %v541 = vpop.f32.mrf.mxu0
      %v542 = vadd.f32 %v246, %v541
      %v543 = vpop.f32.mrf.mxu0
      %544 = vmatprep.mubr.bf16.mxu0 0
      %545 = vmatmul.mubr.bf16.gmra.mxu0 %v396
      %v546 = vpop.f32.mrf.mxu0
      %v547 = vadd.f32 %v246, %v546
      %v548 = vpop.f32.mrf.mxu0
      %v549 = vpop.f32.mrf.mxu0
      %v550 = vadd.f32 %v246, %v549
      %v551 = vpop.f32.mrf.mxu0
      %552 = vmatprep.mubr.bf16.mxu0 0
      %553 = vmatmul.mubr.bf16.gmra.mxu0 %v399
      %v554 = vpop.f32.mrf.mxu0
      %v555 = vadd.f32 %v246, %v554
      %v556 = vpop.f32.mrf.mxu0
      %v557 = vpop.f32.mrf.mxu0
      %v558 = vadd.f32 %v246, %v557
      %v559 = vpop.f32.mrf.mxu0
      %560 = vmatprep.mubr.bf16.mxu0 0
      %561 = vmatmul.mubr.bf16.gmra.mxu0 %v402
      %v562 = vpop.f32.mrf.mxu0
      %v563 = vadd.f32 %v246, %v562
      %v564 = vpop.f32.mrf.mxu0
      %v565 = vpop.f32.mrf.mxu0
      %v566 = vadd.f32 %v246, %v565
      %v567 = vpop.f32.mrf.mxu0
      %568 = vdwg.mxu0
      %v569 = vxor.u32 %v443, 2147483648
      %v570 = vxor.u32 %v446, 2147483648
      %v571 = vxor.u32 %v451, 2147483648
      %v572 = vxor.u32 %v454, 2147483648
      %v573 = vxor.u32 %v459, 2147483648
      %v574 = vxor.u32 %v462, 2147483648
      %v575 = vxor.u32 %v467, 2147483648
      %v576 = vxor.u32 %v470, 2147483648
      %v577 = vxor.u32 %v475, 2147483648
      %v578 = vxor.u32 %v478, 2147483648
      %v579 = vxor.u32 %v483, 2147483648
      %v580 = vxor.u32 %v486, 2147483648
      %v581 = vxor.u32 %v491, 2147483648
      %v582 = vxor.u32 %v494, 2147483648
      %v583 = vxor.u32 %v499, 2147483648
      %v584 = vxor.u32 %v502, 2147483648
      %v585 = vxor.u32 %v507, 2147483648
      %v586 = vxor.u32 %v510, 2147483648
      %v587 = vxor.u32 %v515, 2147483648
      %v588 = vxor.u32 %v518, 2147483648
      %v589 = vxor.u32 %v523, 2147483648
      %v590 = vxor.u32 %v526, 2147483648
      %v591 = vxor.u32 %v531, 2147483648
      %v592 = vxor.u32 %v534, 2147483648
      %v593 = vxor.u32 %v539, 2147483648
      %v594 = vxor.u32 %v542, 2147483648
      %v595 = vxor.u32 %v547, 2147483648
      %v596 = vxor.u32 %v550, 2147483648
      %v597 = vxor.u32 %v555, 2147483648
      %v598 = vxor.u32 %v558, 2147483648
      %v599 = vxor.u32 %v563, 2147483648
      %v600 = vxor.u32 %v566, 2147483648
      %v601 = vmul.f32 %v569, 1.442695
      %v602 = vpow.pop %v601
      %v603 = vmul.f32 %v570, 1.442695
      %v604 = vpow.pop %v603
      %v605 = vmul.f32 %v571, 1.442695
      %v606 = vpow.pop %v605
      %v607 = vmul.f32 %v572, 1.442695
      %v608 = vpow.pop %v607
      %v609 = vmul.f32 %v573, 1.442695
      %v610 = vpow.pop %v609
      %v611 = vmul.f32 %v574, 1.442695
      %v612 = vpow.pop %v611
      %v613 = vmul.f32 %v575, 1.442695
      %v614 = vpow.pop %v613
      %v615 = vmul.f32 %v576, 1.442695
      %v616 = vpow.pop %v615
      %v617 = vmul.f32 %v577, 1.442695
      %v618 = vpow.pop %v617
      %v619 = vmul.f32 %v578, 1.442695
      %v620 = vpow.pop %v619
      %v621 = vmul.f32 %v579, 1.442695
      %v622 = vpow.pop %v621
      %v623 = vmul.f32 %v580, 1.442695
      %v624 = vpow.pop %v623
      %v625 = vmul.f32 %v581, 1.442695
      %v626 = vpow.pop %v625
      %v627 = vmul.f32 %v582, 1.442695
      %v628 = vpow.pop %v627
      %v629 = vmul.f32 %v583, 1.442695
      %v630 = vpow.pop %v629
      %v631 = vmul.f32 %v584, 1.442695
      %v632 = vpow.pop %v631
      %v633 = vmul.f32 %v585, 1.442695
      %v634 = vpow.pop %v633
      %v635 = vmul.f32 %v586, 1.442695
      %v636 = vpow.pop %v635
      %v637 = vmul.f32 %v587, 1.442695
      %v638 = vpow.pop %v637
      %v639 = vmul.f32 %v588, 1.442695
      %v640 = vpow.pop %v639
      %v641 = vmul.f32 %v589, 1.442695
      %v642 = vpow.pop %v641
      %v643 = vmul.f32 %v590, 1.442695
      %v644 = vpow.pop %v643
      %v645 = vmul.f32 %v591, 1.442695
      %v646 = vpow.pop %v645
      %v647 = vmul.f32 %v592, 1.442695
      %v648 = vpow.pop %v647
      %v649 = vmul.f32 %v593, 1.442695
      %v650 = vpow.pop %v649
      %v651 = vmul.f32 %v594, 1.442695
      %v652 = vpow.pop %v651
      %v653 = vmul.f32 %v595, 1.442695
      %v654 = vpow.pop %v653
      %v655 = vmul.f32 %v596, 1.442695
      %v656 = vpow.pop %v655
      %v657 = vmul.f32 %v597, 1.442695
      %v658 = vpow.pop %v657
      %v659 = vmul.f32 %v598, 1.442695
      %v660 = vpow.pop %v659
      %v661 = vmul.f32 %v599, 1.442695
      %v662 = vpow.pop %v661
      %v663 = vmul.f32 %v600, 1.442695
      %v664 = vpow.pop %v663
      %v665 = vadd.f32 %v602, 1.0
      %v666 = vadd.f32 %v604, 1.0
      %v667 = vadd.f32 %v606, 1.0
      %v668 = vadd.f32 %v608, 1.0
      %v669 = vadd.f32 %v610, 1.0
      %v670 = vadd.f32 %v612, 1.0
      %v671 = vadd.f32 %v614, 1.0
      %v672 = vadd.f32 %v616, 1.0
      %v673 = vadd.f32 %v618, 1.0
      %v674 = vadd.f32 %v620, 1.0
      %v675 = vadd.f32 %v622, 1.0
      %v676 = vadd.f32 %v624, 1.0
      %v677 = vadd.f32 %v626, 1.0
      %v678 = vadd.f32 %v628, 1.0
      %v679 = vadd.f32 %v630, 1.0
      %v680 = vadd.f32 %v632, 1.0
      %v681 = vadd.f32 %v634, 1.0
      %v682 = vadd.f32 %v636, 1.0
      %v683 = vadd.f32 %v638, 1.0
      %v684 = vadd.f32 %v640, 1.0
      %v685 = vadd.f32 %v642, 1.0
      %v686 = vadd.f32 %v644, 1.0
      %v687 = vadd.f32 %v646, 1.0
      %v688 = vadd.f32 %v648, 1.0
      %v689 = vadd.f32 %v650, 1.0
      %v690 = vadd.f32 %v652, 1.0
      %v691 = vadd.f32 %v654, 1.0
      %v692 = vadd.f32 %v656, 1.0
      %v693 = vadd.f32 %v658, 1.0
      %v694 = vadd.f32 %v660, 1.0
      %v695 = vadd.f32 %v662, 1.0
      %v696 = vadd.f32 %v664, 1.0
      %v697 = vrcp.pop %v665
      %v698 = vmul.f32 1.0, %v697
      %v699 = vrcp.pop %v666
      %v700 = vmul.f32 1.0, %v699
      %v701 = vrcp.pop %v667
      %v702 = vmul.f32 1.0, %v701
      %v703 = vrcp.pop %v668
      %v704 = vmul.f32 1.0, %v703
      %v705 = vrcp.pop %v669
      %v706 = vmul.f32 1.0, %v705
      %v707 = vrcp.pop %v670
      %v708 = vmul.f32 1.0, %v707
      %v709 = vrcp.pop %v671
      %v710 = vmul.f32 1.0, %v709
      %v711 = vrcp.pop %v672
      %v712 = vmul.f32 1.0, %v711
      %v713 = vrcp.pop %v673
      %v714 = vmul.f32 1.0, %v713
      %v715 = vrcp.pop %v674
      %v716 = vmul.f32 1.0, %v715
      %v717 = vrcp.pop %v675
      %v718 = vmul.f32 1.0, %v717
      %v719 = vrcp.pop %v676
      %v720 = vmul.f32 1.0, %v719
      %v721 = vrcp.pop %v677
      %v722 = vmul.f32 1.0, %v721
      %v723 = vrcp.pop %v678
      %v724 = vmul.f32 1.0, %v723
      %v725 = vrcp.pop %v679
      %v726 = vmul.f32 1.0, %v725
      %v727 = vrcp.pop %v680
      %v728 = vmul.f32 1.0, %v727
      %v729 = vrcp.pop %v681
      %v730 = vmul.f32 1.0, %v729
      %v731 = vrcp.pop %v682
      %v732 = vmul.f32 1.0, %v731
      %v733 = vrcp.pop %v683
      %v734 = vmul.f32 1.0, %v733
      %v735 = vrcp.pop %v684
      %v736 = vmul.f32 1.0, %v735
      %v737 = vrcp.pop %v685
      %v738 = vmul.f32 1.0, %v737
      %v739 = vrcp.pop %v686
      %v740 = vmul.f32 1.0, %v739
      %v741 = vrcp.pop %v687
      %v742 = vmul.f32 1.0, %v741
      %v743 = vrcp.pop %v688
      %v744 = vmul.f32 1.0, %v743
      %v745 = vrcp.pop %v689
      %v746 = vmul.f32 1.0, %v745
      %v747 = vrcp.pop %v690
      %v748 = vmul.f32 1.0, %v747
      %v749 = vrcp.pop %v691
      %v750 = vmul.f32 1.0, %v749
      %v751 = vrcp.pop %v692
      %v752 = vmul.f32 1.0, %v751
      %v753 = vrcp.pop %v693
      %v754 = vmul.f32 1.0, %v753
      %v755 = vrcp.pop %v694
      %v756 = vmul.f32 1.0, %v755
      %v757 = vrcp.pop %v695
      %v758 = vmul.f32 1.0, %v757
      %v759 = vrcp.pop %v696
      %v760 = vmul.f32 1.0, %v759
      %v761 = vmul.f32 %v443, %v698
      %v762 = vmul.f32 %v446, %v700
      %v763 = vmul.f32 %v451, %v702
      %v764 = vmul.f32 %v454, %v704
      %v765 = vmul.f32 %v459, %v706
      %v766 = vmul.f32 %v462, %v708
      %v767 = vmul.f32 %v467, %v710
      %v768 = vmul.f32 %v470, %v712
      %v769 = vmul.f32 %v475, %v714
      %v770 = vmul.f32 %v478, %v716
      %v771 = vmul.f32 %v483, %v718
      %v772 = vmul.f32 %v486, %v720
      %v773 = vmul.f32 %v491, %v722
      %v774 = vmul.f32 %v494, %v724
      %v775 = vmul.f32 %v499, %v726
      %v776 = vmul.f32 %v502, %v728
      %v777 = vmul.f32 %v507, %v730
      %v778 = vmul.f32 %v510, %v732
      %v779 = vmul.f32 %v515, %v734
      %v780 = vmul.f32 %v518, %v736
      %v781 = vmul.f32 %v523, %v738
      %v782 = vmul.f32 %v526, %v740
      %v783 = vmul.f32 %v531, %v742
      %v784 = vmul.f32 %v534, %v744
      %v785 = vmul.f32 %v539, %v746
      %v786 = vmul.f32 %v542, %v748
      %v787 = vmul.f32 %v547, %v750
      %v788 = vmul.f32 %v550, %v752
      %v789 = vmul.f32 %v555, %v754
      %v790 = vmul.f32 %v558, %v756
      %v791 = vmul.f32 %v563, %v758
      %v792 = vmul.f32 %v566, %v760
      %793 = vst [vmem:[%s192] sm:$0xff] %v761
      %794 = vst [vmem:[%s192 + $0x8] sm:$0xff] %v762
      %795 = vst [vmem:[%s192 + $0x10] sm:$0xff] %v763
      %796 = vst [vmem:[%s192 + $0x18] sm:$0xff] %v764
      %797 = vst [vmem:[%s192 + $0x20] sm:$0xff] %v765
      %798 = vst [vmem:[%s192 + $0x28] sm:$0xff] %v766
      %799 = vst [vmem:[%s192 + $0x30] sm:$0xff] %v767
      %800 = vst [vmem:[%s192 + $0x38] sm:$0xff] %v768
      %801 = vst [vmem:[%s192 + $0x40] sm:$0xff] %v769
      %802 = vst [vmem:[%s192 + $0x48] sm:$0xff] %v770
      %803 = vst [vmem:[%s192 + $0x50] sm:$0xff] %v771
      %804 = vst [vmem:[%s192 + $0x58] sm:$0xff] %v772
      %805 = vst [vmem:[%s192 + $0x60] sm:$0xff] %v773
      %806 = vst [vmem:[%s192 + $0x68] sm:$0xff] %v774
      %807 = vst [vmem:[%s192 + $0x70] sm:$0xff] %v775
      %808 = vst [vmem:[%s192 + $0x78] sm:$0xff] %v776
      %809 = vst [vmem:[%s192 + $0x80] sm:$0xff] %v777
      %810 = vst [vmem:[%s192 + $0x88] sm:$0xff] %v778
      %811 = vst [vmem:[%s192 + $0x90] sm:$0xff] %v779
      %812 = vst [vmem:[%s192 + $0x98] sm:$0xff] %v780
      %813 = vst [vmem:[%s192 + $0xa0] sm:$0xff] %v781
      %814 = vst [vmem:[%s192 + $0xa8] sm:$0xff] %v782
      %815 = vst [vmem:[%s192 + $0xb0] sm:$0xff] %v783
      %816 = vst [vmem:[%s192 + $0xb8] sm:$0xff] %v784
      %817 = vst [vmem:[%s192 + $0xc0] sm:$0xff] %v785
      %818 = vst [vmem:[%s192 + $0xc8] sm:$0xff] %v786
      %819 = vst [vmem:[%s192 + $0xd0] sm:$0xff] %v787
      %820 = vst [vmem:[%s192 + $0xd8] sm:$0xff] %v788
      %821 = vst [vmem:[%s192 + $0xe0] sm:$0xff] %v789
      %822 = vst [vmem:[%s192 + $0xe8] sm:$0xff] %v790
      %823 = vst [vmem:[%s192 + $0xf0] sm:$0xff] %v791
      %824 = vst [vmem:[%s192 + $0xf8] sm:$0xff] %v792
      %s825 = smul.u32 32, %s19
      %p826 = scmp.lt.s32.totalorder %s18, 1
      %s827 = scalar_select %p826, %s18, 1
      %p828 = scmp.lt.s32.totalorder %s825, 31
      %s829 = scalar_select %p828, %s825, 31
      %s830 = smul.addr %s827, 32
      %s831 = sadd.s32 %s829, %s830
      %s832 = smul.addr %s831, 8
      %s833 = scalar_lea.vmem %s3, %s832
      // Predicated region
      $region33: #{conv_bn_silu.1} parent=31 // pred_check
        %p834 = pneg %p114
      $region34: #{conv_bn_silu.1} parent=31 // pred_check_branch
        %836 = sbr.rel (%p834) target = $region36
      $region35: #{conv_bn_silu.1} parent=31 // pred_region
        %s837 = smul.u32 32, %s19
      $region36: #{conv_bn_silu.1} parent=31 // pred_fallthru
        _
    $region32: #{conv_bn_silu.1} parent=5 // pred_fallthru
      _
    %p838 = scmp.le.s32.totalorder 2, %s9
    // Predicated region
    $region37: #{conv_bn_silu.1} parent=5 // pred_check
      %p839 = pneg %p838
    $region38: #{conv_bn_silu.1} parent=5 // pred_check_branch
      %841 = sbr.rel (%p839) target = $region40
    $region39: #{conv_bn_silu.1} parent=5 // pred_region
      %s842 = ssub.s32 %s9, 2
      // Predicated region
      $region41: #{conv_bn_silu.1} parent=39 // pred_check
        %p843 = pneg %p120
      $region42: #{conv_bn_silu.1} parent=39 // pred_check_branch
        %845 = sbr.rel (%p843) target = $region44
      $region43: #{conv_bn_silu.1} parent=39 // pred_region
        %s846 = smul.u32 32, %s21
        %p847 = scmp.lt.s32.totalorder %s20, 1
        %s848 = scalar_select %p847, %s20, 1
        %p849 = scmp.lt.s32.totalorder %s846, 31
        %s850 = scalar_select %p849, %s846, 31
        %s851 = smul.addr %s848, 32
        %s852 = sadd.s32 %s850, %s851
        %s853 = smul.addr %s852, 8
        %s854 = scalar_lea.vmem %s3, %s853
      $region44: #{conv_bn_silu.1} parent=39 // pred_fallthru
        _
    $region40: #{conv_bn_silu.1} parent=5 // pred_fallthru
      _
  $region6: #{conv_bn_silu.1} parent=0 // loop_footer
    %s13 = sadd.s32 1, %s9
  $region7: #{conv_bn_silu.1} parent=0 // loop_footer_branch
    %8 = sbr.rel target = $region3
  $region8: #{conv_bn_silu.1} parent=0 // loop_exit
    _

</llo_original>
